<compile_context>
chip_gen: v7x
topology: tpu7x:2x2x1
jax: 0.10.0
libtpu: 0.0.40
codegen_flags: <defaults>
</compile_context>

<pallas_src>
import functools

import jax
import jax.numpy as jnp
from jax import lax
from jax.experimental import pallas as pl
from jax.experimental.pallas import tpu as pltpu


def _round_up(n, m):
    return ((n + m - 1) // m) * m


def rnn_kernel(x_ref, h0_ref, wih_ref, whh_ref, bh_ref, wlin_ref, blin_ref,
               out_ref, hbuf_ref, *, seq_len, batch_p):
    """Single-block kernel (no grid): everything lives in VMEM.

    x_ref   : (S*Bp, Ip)  time-major, batch-padded, zero-padded inputs
    h0_ref  : (Bp, Hp)    initial hidden state (padded)
    wih_ref : (Ip, Hp)    W_ih^T (zero-padded)
    whh_ref : (Hp, Hp)    W_hh^T (zero-padded rows/cols)
    bh_ref  : (1, Hp)     b_ih + b_hh (zero-padded)
    wlin_ref: (Hp, Op)    W_lin^T (zero-padded)
    blin_ref: (1, Op)     b_lin (zero-padded)
    out_ref : (S*Bp, Op)  per-timestep linear output (padded)
    hbuf_ref: (S*Bp, Hp)  VMEM scratch holding all hidden states
    """
    # --- Hoisted input projection: one big matmul, off the recurrence chain. ---
    xw = (jnp.dot(x_ref[...], wih_ref[...], preferred_element_type=jnp.float32)
          + bh_ref[...])                                            # (S*Bp, Hp)

    # --- Serial recurrence: per step only (Bp,Hp)@(Hp,Hp) + tanh. ---
    h = h0_ref[...]                                                 # (Bp, Hp)
    whh = whh_ref[...]                                              # stays resident
    for t in range(seq_len):                                        # static unroll
        lo = t * batch_p
        pre = xw[lo:lo + batch_p, :] + jnp.dot(
            h, whh, preferred_element_type=jnp.float32)
        h = jnp.tanh(pre)
        hbuf_ref[lo:lo + batch_p, :] = h                            # tile-aligned store

    # --- Hoisted linear head: one dense matmul, lane-dense (128-wide) store. ---
    out_ref[...] = (jnp.dot(hbuf_ref[...], wlin_ref[...],
                            preferred_element_type=jnp.float32)
                    + blin_ref[...])


def baseline_rnn_forward(x, h0, w_ih, w_hh, b_ih, b_hh, w_lin, b_lin):
    """Pallas equivalent of baselineRNN.forward.

    x    : (B, S, I) float32
    h0   : (num_layers=1, B, H)
    w_ih : (H, I), w_hh: (H, H), b_ih: (H,), b_hh: (H,)
    w_lin: (O, H), b_lin: (O,)
    returns: (B, S, O)
    """
    B, S, I = x.shape
    H = w_ih.shape[0]
    O = w_lin.shape[0]

    Bp = _round_up(B, 8)          # full sublane tile per timestep
    Ip = _round_up(I, 128)        # lane-pad contraction dim
    Hp = _round_up(H, 128)        # lane-pad hidden dim
    Op = _round_up(O, 128)        # lane-pad output dim

    f32 = jnp.float32

    # Time-major, batch/feature zero-padded inputs: (B,S,I) -> (S*Bp, Ip).
    x_t = jnp.transpose(x.astype(f32), (1, 0, 2))                        # (S, B, I)
    x_p = jnp.zeros((S, Bp, Ip), f32).at[:, :B, :I].set(x_t)
    x2d = x_p.reshape(S * Bp, Ip)

    h0_p = jnp.zeros((Bp, Hp), f32).at[:B, :H].set(h0[0].astype(f32))

    # Zero-padded weights: padded rows/cols are exactly zero so padded hidden
    # lanes stay 0 through tanh and never contaminate real lanes.
    wih_p = jnp.zeros((Ip, Hp), f32).at[:I, :H].set(w_ih.T.astype(f32))
    whh_p = jnp.zeros((Hp, Hp), f32).at[:H, :H].set(w_hh.T.astype(f32))
    bh_p = jnp.zeros((1, Hp), f32).at[0, :H].set((b_ih + b_hh).astype(f32))
    wlin_p = jnp.zeros((Hp, Op), f32).at[:H, :O].set(w_lin.T.astype(f32))
    blin_p = jnp.zeros((1, Op), f32).at[0, :O].set(b_lin.astype(f32))

    kernel = functools.partial(rnn_kernel, seq_len=S, batch_p=Bp)

    out2d = pl.pallas_call(
        kernel,
        out_shape=jax.ShapeDtypeStruct((S * Bp, Op), f32),
        scratch_shapes=[pltpu.VMEM((S * Bp, Hp), f32)],
    )(x2d, h0_p, wih_p, whh_p, bh_p, wlin_p, blin_p)

    # TODO(synk): on v7x a size-2 "parallel" grid axis over batch halves would use
    # both TensorCores; skipped here since B=2 is a single sublane tile.
    out = out2d.reshape(S, Bp, Op)[:, :B, :O]                            # (S, B, O)
    return jnp.transpose(out, (1, 0, 2))                                 # (B, S, O)


def reference_forward(x, h0, w_ih, w_hh, b_ih, b_hh, w_lin, b_lin):
    """Pure-JAX reference mirroring torch.nn.RNN (tanh) + nn.Linear."""

    def scan_step(h, x_t):
        h_new = jnp.tanh(x_t @ w_ih.T + b_ih + h @ w_hh.T + b_hh)
        return h_new, h_new

    _, hs = lax.scan(scan_step, h0[0], jnp.transpose(x, (1, 0, 2)))      # (S, B, H)
    hs = jnp.transpose(hs, (1, 0, 2))                                    # (B, S, H)
    return hs @ w_lin.T + b_lin


if __name__ == "__main__":
    # Module hyper-params from the script: input_size=20, hidden_size=15,
    # output_size=3, num_layers=1. Small batch=2, seq=8.
    B, S, I, H, O = 2, 8, 20, 15, 3

    key = jax.random.PRNGKey(0)
    ks = jax.random.split(key, 8)
    bound_rnn = 1.0 / jnp.sqrt(H)
    bound_lin = 1.0 / jnp.sqrt(H)

    w_ih = jax.random.uniform(ks[0], (H, I), jnp.float32, -bound_rnn, bound_rnn)
    w_hh = jax.random.uniform(ks[1], (H, H), jnp.float32, -bound_rnn, bound_rnn)
    b_ih = jax.random.uniform(ks[2], (H,), jnp.float32, -bound_rnn, bound_rnn)
    b_hh = jax.random.uniform(ks[3], (H,), jnp.float32, -bound_rnn, bound_rnn)
    w_lin = jax.random.uniform(ks[4], (O, H), jnp.float32, -bound_lin, bound_lin)
    b_lin = jax.random.uniform(ks[5], (O,), jnp.float32, -bound_lin, bound_lin)

    h0 = jax.random.normal(ks[6], (1, B, H), jnp.float32)   # (num_layers, B, H)
    x = jax.random.normal(ks[7], (B, S, I), jnp.float32)

    out = baseline_rnn_forward(x, h0, w_ih, w_hh, b_ih, b_hh, w_lin, b_lin)
    out = jax.block_until_ready(out)

    ref = reference_forward(x, h0, w_ih, w_hh, b_ih, b_hh, w_lin, b_lin)
    assert out.shape == (B, S, O)
    assert jnp.allclose(out, ref, atol=1e-5, rtol=1e-5)

    print("KERNEL_OK")
</pallas_src>

<mosaic_0001>
module attributes {stable_mosaic.version = 11 : i64} {
  func.func @rnn_kernel(%arg0: memref<64x128xf32, #tpu.memory_space<vmem>>, %arg1: memref<8x128xf32, #tpu.memory_space<vmem>>, %arg2: memref<128x128xf32, #tpu.memory_space<vmem>>, %arg3: memref<128x128xf32, #tpu.memory_space<vmem>>, %arg4: memref<1x128xf32, #tpu.memory_space<vmem>>, %arg5: memref<128x128xf32, #tpu.memory_space<vmem>>, %arg6: memref<1x128xf32, #tpu.memory_space<vmem>>, %arg7: memref<64x128xf32, #tpu.memory_space<vmem>>, %arg8: memref<64x128xf32, #tpu.memory_space<vmem>>) attributes {dimension_semantics = [], scalar_prefetch = 0 : i64, scratch_operands = 1 : i64, tpu.core_type = #tpu.core_type<tc>} {
    %c0 = arith.constant 0 : index
    %c0_0 = arith.constant 0 : index
    %0 = vector.load %arg0[%c0, %c0_0] : memref<64x128xf32, #tpu.memory_space<vmem>>, vector<64x128xf32>
    %c0_1 = arith.constant 0 : index
    %c0_2 = arith.constant 0 : index
    %1 = vector.load %arg2[%c0_1, %c0_2] : memref<128x128xf32, #tpu.memory_space<vmem>>, vector<128x128xf32>
    %cst = arith.constant dense<0.000000e+00> : vector<64x128xf32>
    %2 = tpu.matmul %0, %1, %cst {dimension_numbers = #tpu.dot_dimension_numbers<[1], [0], [0], [1], [0, 0, 1, 1], [], []>} : vector<64x128xf32>, vector<128x128xf32>, vector<64x128xf32> -> vector<64x128xf32>
    %c0_3 = arith.constant 0 : index
    %c0_4 = arith.constant 0 : index
    %3 = vector.load %arg4[%c0_3, %c0_4] : memref<1x128xf32, #tpu.memory_space<vmem>>, vector<1x128xf32>
    %4 = vector.broadcast %3 : vector<1x128xf32> to vector<64x128xf32>
    %5 = arith.addf %2, %4 : vector<64x128xf32>
    %c0_5 = arith.constant 0 : index
    %c0_6 = arith.constant 0 : index
    %6 = vector.load %arg1[%c0_5, %c0_6] : memref<8x128xf32, #tpu.memory_space<vmem>>, vector<8x128xf32>
    %c0_7 = arith.constant 0 : index
    %c0_8 = arith.constant 0 : index
    %7 = vector.load %arg3[%c0_7, %c0_8] : memref<128x128xf32, #tpu.memory_space<vmem>>, vector<128x128xf32>
    %8 = vector.extract_strided_slice %5 {offsets = [0, 0], sizes = [8, 128], strides = [1, 1]} : vector<64x128xf32> to vector<8x128xf32>
    %cst_9 = arith.constant dense<0.000000e+00> : vector<8x128xf32>
    %9 = tpu.matmul %6, %7, %cst_9 {dimension_numbers = #tpu.dot_dimension_numbers<[1], [0], [0], [1], [0, 0, 1, 1], [], []>} : vector<8x128xf32>, vector<128x128xf32>, vector<8x128xf32> -> vector<8x128xf32>
    %10 = arith.addf %8, %9 : vector<8x128xf32>
    %11 = math.tanh %10 : vector<8x128xf32>
    %c0_10 = arith.constant 0 : index
    %c0_11 = arith.constant 0 : index
    %12 = vector.load %arg8[%c0_10, %c0_11] : memref<64x128xf32, #tpu.memory_space<vmem>>, vector<8x128xf32>
    tpu.vector_store %arg8[%c0_10, %c0_11], %11 {strides = array<i32>} : memref<64x128xf32, #tpu.memory_space<vmem>>, vector<8x128xf32>,
    %13 = vector.extract_strided_slice %5 {offsets = [8, 0], sizes = [8, 128], strides = [1, 1]} : vector<64x128xf32> to vector<8x128xf32>
    %cst_12 = arith.constant dense<0.000000e+00> : vector<8x128xf32>
    %14 = tpu.matmul %11, %7, %cst_12 {dimension_numbers = #tpu.dot_dimension_numbers<[1], [0], [0], [1], [0, 0, 1, 1], [], []>} : vector<8x128xf32>, vector<128x128xf32>, vector<8x128xf32> -> vector<8x128xf32>
    %15 = arith.addf %13, %14 : vector<8x128xf32>
    %16 = math.tanh %15 : vector<8x128xf32>
    %c8 = arith.constant 8 : index
    %c0_13 = arith.constant 0 : index
    %17 = vector.load %arg8[%c8, %c0_13] : memref<64x128xf32, #tpu.memory_space<vmem>>, vector<8x128xf32>
    tpu.vector_store %arg8[%c8, %c0_13], %16 {strides = array<i32>} : memref<64x128xf32, #tpu.memory_space<vmem>>, vector<8x128xf32>,
    %18 = vector.extract_strided_slice %5 {offsets = [16, 0], sizes = [8, 128], strides = [1, 1]} : vector<64x128xf32> to vector<8x128xf32>
    %cst_14 = arith.constant dense<0.000000e+00> : vector<8x128xf32>
    %19 = tpu.matmul %16, %7, %cst_14 {dimension_numbers = #tpu.dot_dimension_numbers<[1], [0], [0], [1], [0, 0, 1, 1], [], []>} : vector<8x128xf32>, vector<128x128xf32>, vector<8x128xf32> -> vector<8x128xf32>
    %20 = arith.addf %18, %19 : vector<8x128xf32>
    %21 = math.tanh %20 : vector<8x128xf32>
    %c16 = arith.constant 16 : index
    %c0_15 = arith.constant 0 : index
    %22 = vector.load %arg8[%c16, %c0_15] : memref<64x128xf32, #tpu.memory_space<vmem>>, vector<8x128xf32>
    tpu.vector_store %arg8[%c16, %c0_15], %21 {strides = array<i32>} : memref<64x128xf32, #tpu.memory_space<vmem>>, vector<8x128xf32>,
    %23 = vector.extract_strided_slice %5 {offsets = [24, 0], sizes = [8, 128], strides = [1, 1]} : vector<64x128xf32> to vector<8x128xf32>
    %cst_16 = arith.constant dense<0.000000e+00> : vector<8x128xf32>
    %24 = tpu.matmul %21, %7, %cst_16 {dimension_numbers = #tpu.dot_dimension_numbers<[1], [0], [0], [1], [0, 0, 1, 1], [], []>} : vector<8x128xf32>, vector<128x128xf32>, vector<8x128xf32> -> vector<8x128xf32>
    %25 = arith.addf %23, %24 : vector<8x128xf32>
    %26 = math.tanh %25 : vector<8x128xf32>
    %c24 = arith.constant 24 : index
    %c0_17 = arith.constant 0 : index
    %27 = vector.load %arg8[%c24, %c0_17] : memref<64x128xf32, #tpu.memory_space<vmem>>, vector<8x128xf32>
    tpu.vector_store %arg8[%c24, %c0_17], %26 {strides = array<i32>} : memref<64x128xf32, #tpu.memory_space<vmem>>, vector<8x128xf32>,
    %28 = vector.extract_strided_slice %5 {offsets = [32, 0], sizes = [8, 128], strides = [1, 1]} : vector<64x128xf32> to vector<8x128xf32>
    %cst_18 = arith.constant dense<0.000000e+00> : vector<8x128xf32>
    %29 = tpu.matmul %26, %7, %cst_18 {dimension_numbers = #tpu.dot_dimension_numbers<[1], [0], [0], [1], [0, 0, 1, 1], [], []>} : vector<8x128xf32>, vector<128x128xf32>, vector<8x128xf32> -> vector<8x128xf32>
    %30 = arith.addf %28, %29 : vector<8x128xf32>
    %31 = math.tanh %30 : vector<8x128xf32>
    %c32 = arith.constant 32 : index
    %c0_19 = arith.constant 0 : index
    %32 = vector.load %arg8[%c32, %c0_19] : memref<64x128xf32, #tpu.memory_space<vmem>>, vector<8x128xf32>
    tpu.vector_store %arg8[%c32, %c0_19], %31 {strides = array<i32>} : memref<64x128xf32, #tpu.memory_space<vmem>>, vector<8x128xf32>,
    %33 = vector.extract_strided_slice %5 {offsets = [40, 0], sizes = [8, 128], strides = [1, 1]} : vector<64x128xf32> to vector<8x128xf32>
    %cst_20 = arith.constant dense<0.000000e+00> : vector<8x128xf32>
    %34 = tpu.matmul %31, %7, %cst_20 {dimension_numbers = #tpu.dot_dimension_numbers<[1], [0], [0], [1], [0, 0, 1, 1], [], []>} : vector<8x128xf32>, vector<128x128xf32>, vector<8x128xf32> -> vector<8x128xf32>
    %35 = arith.addf %33, %34 : vector<8x128xf32>
    %36 = math.tanh %35 : vector<8x128xf32>
    %c40 = arith.constant 40 : index
    %c0_21 = arith.constant 0 : index
    %37 = vector.load %arg8[%c40, %c0_21] : memref<64x128xf32, #tpu.memory_space<vmem>>, vector<8x128xf32>
    tpu.vector_store %arg8[%c40, %c0_21], %36 {strides = array<i32>} : memref<64x128xf32, #tpu.memory_space<vmem>>, vector<8x128xf32>,
    %38 = vector.extract_strided_slice %5 {offsets = [48, 0], sizes = [8, 128], strides = [1, 1]} : vector<64x128xf32> to vector<8x128xf32>
    %cst_22 = arith.constant dense<0.000000e+00> : vector<8x128xf32>
    %39 = tpu.matmul %36, %7, %cst_22 {dimension_numbers = #tpu.dot_dimension_numbers<[1], [0], [0], [1], [0, 0, 1, 1], [], []>} : vector<8x128xf32>, vector<128x128xf32>, vector<8x128xf32> -> vector<8x128xf32>
    %40 = arith.addf %38, %39 : vector<8x128xf32>
    %41 = math.tanh %40 : vector<8x128xf32>
    %c48 = arith.constant 48 : index
    %c0_23 = arith.constant 0 : index
    %42 = vector.load %arg8[%c48, %c0_23] : memref<64x128xf32, #tpu.memory_space<vmem>>, vector<8x128xf32>
    tpu.vector_store %arg8[%c48, %c0_23], %41 {strides = array<i32>} : memref<64x128xf32, #tpu.memory_space<vmem>>, vector<8x128xf32>,
    %43 = vector.extract_strided_slice %5 {offsets = [56, 0], sizes = [8, 128], strides = [1, 1]} : vector<64x128xf32> to vector<8x128xf32>
    %cst_24 = arith.constant dense<0.000000e+00> : vector<8x128xf32>
    %44 = tpu.matmul %41, %7, %cst_24 {dimension_numbers = #tpu.dot_dimension_numbers<[1], [0], [0], [1], [0, 0, 1, 1], [], []>} : vector<8x128xf32>, vector<128x128xf32>, vector<8x128xf32> -> vector<8x128xf32>
    %45 = arith.addf %43, %44 : vector<8x128xf32>
    %46 = math.tanh %45 : vector<8x128xf32>
    %c56 = arith.constant 56 : index
    %c0_25 = arith.constant 0 : index
    %47 = vector.load %arg8[%c56, %c0_25] : memref<64x128xf32, #tpu.memory_space<vmem>>, vector<8x128xf32>
    tpu.vector_store %arg8[%c56, %c0_25], %46 {strides = array<i32>} : memref<64x128xf32, #tpu.memory_space<vmem>>, vector<8x128xf32>,
    %c0_26 = arith.constant 0 : index
    %c0_27 = arith.constant 0 : index
    %48 = vector.load %arg8[%c0_26, %c0_27] : memref<64x128xf32, #tpu.memory_space<vmem>>, vector<64x128xf32>
    %c0_28 = arith.constant 0 : index
    %c0_29 = arith.constant 0 : index
    %49 = vector.load %arg5[%c0_28, %c0_29] : memref<128x128xf32, #tpu.memory_space<vmem>>, vector<128x128xf32>
    %cst_30 = arith.constant dense<0.000000e+00> : vector<64x128xf32>
    %50 = tpu.matmul %48, %49, %cst_30 {dimension_numbers = #tpu.dot_dimension_numbers<[1], [0], [0], [1], [0, 0, 1, 1], [], []>} : vector<64x128xf32>, vector<128x128xf32>, vector<64x128xf32> -> vector<64x128xf32>
    %c0_31 = arith.constant 0 : index
    %c0_32 = arith.constant 0 : index
    %51 = vector.load %arg6[%c0_31, %c0_32] : memref<1x128xf32, #tpu.memory_space<vmem>>, vector<1x128xf32>
    %52 = vector.broadcast %51 : vector<1x128xf32> to vector<64x128xf32>
    %53 = arith.addf %50, %52 : vector<64x128xf32>
    %c0_33 = arith.constant 0 : index
    %c0_34 = arith.constant 0 : index
    %54 = vector.load %arg7[%c0_33, %c0_34] : memref<64x128xf32, #tpu.memory_space<vmem>>, vector<64x128xf32>
    tpu.vector_store %arg7[%c0_33, %c0_34], %53 {strides = array<i32>} : memref<64x128xf32, #tpu.memory_space<vmem>>, vector<64x128xf32>,
    return
  }
}

</mosaic_0001>

<llo_original>
// kernel: tpu_custom_call.1
$region0: #{tpu_custom_call.1}
  #allocation0 [shape = 'u32[]', space=smem, size = 0x4, offset = 0x4, fixed_abs, tag = 'smem constant byte address 0x4 - core index']
  #allocation1 [shape = 'u32[144,128]{1,0:T(1,128)}', space=vmem, size = 0x12000, scoped, tag = 'internal scratch']
  #allocation2 [shape = 'f32[64,128]{1,0:T(8,128)}', space=vmem, size = 0x8000, scoped, tag = 'scratch operand']
  %s0 = inlined_call_operand.hbm [shape: f32[64,128], index: 0, kind: input, shape index: {}]
  %s1 = inlined_call_operand.hbm [shape: f32[8,128], index: 1, kind: input, shape index: {}]
  %s2 = inlined_call_operand.hbm [shape: f32[128,128], index: 2, kind: input, shape index: {}]
  %s3 = inlined_call_operand.hbm [shape: f32[128,128], index: 3, kind: input, shape index: {}]
  %s4 = inlined_call_operand.vmem [shape: f32[1,128], index: 4, kind: input, shape index: {}]
  %s5 = inlined_call_operand.hbm [shape: f32[128,128], index: 5, kind: input, shape index: {}]
  %s6 = inlined_call_operand.vmem [shape: f32[1,128], index: 6, kind: input, shape index: {}]
  %s7 = inlined_call_operand.hbm [shape: f32[64,128], index: 7, kind: output, shape index: {}]
  %s8 = sld [smem:[#allocation0]]
  $region58: #{tpu_custom_call.1} parent=0
    _
  %s10 = ssub.s32 1, %s8
  %s11 = scalar_select 0, %s10, %s8
  $region1: #{tpu_custom_call.1} parent=0
    #allocation3 [shape = 'u8[32768]{0}', space=vmem, size = 0x8000, scoped, tag = 'input window, operand 0, single buffered']
    #allocation4 [shape = 's32[1]{0}', space=sflag, size = 0x4, scoped, tag = 'scoped memory for tpu_custom_call.1']
    #allocation5 [shape = 's32[1]{0}', space=sflag, size = 0x4, scoped, tag = 'scoped memory for tpu_custom_call.1']
    #allocation6 [shape = 'u8[4096]{0}', space=vmem, size = 0x1000, scoped, tag = 'input window, operand 1, single buffered']
    #allocation7 [shape = 's32[1]{0}', space=sflag, size = 0x4, scoped, tag = 'scoped memory for tpu_custom_call.1']
    #allocation8 [shape = 'u8[65536]{0}', space=vmem, size = 0x10000, scoped, tag = 'input window, operand 2, single buffered']
    #allocation9 [shape = 'u8[65536]{0}', space=vmem, size = 0x10000, scoped, tag = 'input window, operand 3, single buffered']
    #allocation10 [shape = 's32[1]{0}', space=sflag, size = 0x4, scoped, tag = 'scoped memory for tpu_custom_call.1']
    #allocation11 [shape = 'u8[65536]{0}', space=vmem, size = 0x10000, scoped, tag = 'input window, operand 5, single buffered']
    #allocation12 [shape = 'u8[32768]{0}', space=vmem, size = 0x8000, scoped, tag = 'output window, operand 0, single buffered']
    %12 = vsyncpa [#allocation4], 0
    %13 = vsyncpa [#allocation7], 0
    %14 = vsyncpa [#allocation10], 0
    %15 = vsyncpa [#allocation5], 0
    // Predicated region
    $region2: #{tpu_custom_call.1} parent=1 // pred_check
      _
    $region3: #{tpu_custom_call.1} parent=1 // pred_check_branch
      %17 = sbr.rel (0) target = $region5
    $region4: #{tpu_custom_call.1} parent=1 // pred_region
      %s19 = ssub.s32 1024, 1024
      %20 = vsyncadd [#allocation4], %s19
      %s21 = sshll.u32 [#allocation3], 4
      %s22 = int_to_ptr.vmem [resolvable:$true] %s21
      %27 = dma.hbm_to_vmem [thread:$0]  %s0, 1024, %s22, [#allocation4], 128, 128, 8
    $region5: #{tpu_custom_call.1} parent=1 // pred_fallthru
      _
    // Predicated region
    $region6: #{tpu_custom_call.1} parent=1 // pred_check
      _
    $region7: #{tpu_custom_call.1} parent=1 // pred_check_branch
      %29 = sbr.rel (0) target = $region9
    $region8: #{tpu_custom_call.1} parent=1 // pred_region
      %s31 = ssub.s32 128, 128
      %32 = vsyncadd [#allocation7], %s31
      %s34 = sshll.u32 [#allocation6], 4
      %s35 = int_to_ptr.vmem [resolvable:$true] %s34
      %37 = dma.hbm_to_vmem [thread:$0]  %s1, 128, %s35, [#allocation7]
    $region9: #{tpu_custom_call.1} parent=1 // pred_fallthru
      _
    // Predicated region
    $region10: #{tpu_custom_call.1} parent=1 // pred_check
      _
    $region11: #{tpu_custom_call.1} parent=1 // pred_check_branch
      %39 = sbr.rel (0) target = $region13
    $region12: #{tpu_custom_call.1} parent=1 // pred_region
      %s41 = ssub.s32 2048, 2048
      %42 = vsyncadd [#allocation7], %s41
      %s43 = sshll.u32 [#allocation8], 4
      %s44 = int_to_ptr.vmem [resolvable:$true] %s43
      %49 = dma.hbm_to_vmem [thread:$0]  %s2, 2048, %s44, [#allocation7], 128, 128, 8
    $region13: #{tpu_custom_call.1} parent=1 // pred_fallthru
      _
    // Predicated region
    $region14: #{tpu_custom_call.1} parent=1 // pred_check
      _
    $region15: #{tpu_custom_call.1} parent=1 // pred_check_branch
      %51 = sbr.rel (0) target = $region17
    $region16: #{tpu_custom_call.1} parent=1 // pred_region
      %s53 = ssub.s32 2048, 2048
      %54 = vsyncadd [#allocation10], %s53
      %s55 = sshll.u32 [#allocation9], 4
      %s56 = int_to_ptr.vmem [resolvable:$true] %s55
      %61 = dma.hbm_to_vmem [thread:$0]  %s3, 2048, %s56, [#allocation10], 128, 128, 8
    $region17: #{tpu_custom_call.1} parent=1 // pred_fallthru
      _
    // Predicated region
    $region18: #{tpu_custom_call.1} parent=1 // pred_check
      _
    $region19: #{tpu_custom_call.1} parent=1 // pred_check_branch
      %63 = sbr.rel (0) target = $region21
    $region20: #{tpu_custom_call.1} parent=1 // pred_region
      _
    $region21: #{tpu_custom_call.1} parent=1 // pred_fallthru
      _
    // Predicated region
    $region22: #{tpu_custom_call.1} parent=1 // pred_check
      _
    $region23: #{tpu_custom_call.1} parent=1 // pred_check_branch
      %65 = sbr.rel (0) target = $region25
    $region24: #{tpu_custom_call.1} parent=1 // pred_region
      %s67 = ssub.s32 2048, 2048
      %68 = vsyncadd [#allocation10], %s67
      %s69 = sshll.u32 [#allocation11], 4
      %s70 = int_to_ptr.vmem [resolvable:$true] %s69
      %75 = dma.hbm_to_vmem [thread:$0]  %s5, 2048, %s70, [#allocation10], 128, 128, 8
    $region25: #{tpu_custom_call.1} parent=1 // pred_fallthru
      _
    // Predicated region
    $region26: #{tpu_custom_call.1} parent=1 // pred_check
      _
    $region27: #{tpu_custom_call.1} parent=1 // pred_check_branch
      %77 = sbr.rel (0) target = $region29
    $region28: #{tpu_custom_call.1} parent=1 // pred_region
      _
    $region29: #{tpu_custom_call.1} parent=1 // pred_fallthru
      _
    // Predicated region
    $region30: #{tpu_custom_call.1} parent=1 // pred_check
      _
    $region31: #{tpu_custom_call.1} parent=1 // pred_check_branch
      %79 = sbr.rel (0) target = $region33
    $region32: #{tpu_custom_call.1} parent=1 // pred_region
      %80 = dma.done [#allocation4], 1024
    $region33: #{tpu_custom_call.1} parent=1 // pred_fallthru
      _
    // Predicated region
    $region34: #{tpu_custom_call.1} parent=1 // pred_check
      _
    $region35: #{tpu_custom_call.1} parent=1 // pred_check_branch
      %82 = sbr.rel (0) target = $region37
    $region36: #{tpu_custom_call.1} parent=1 // pred_region
      %83 = dma.done [#allocation7], 128
    $region37: #{tpu_custom_call.1} parent=1 // pred_fallthru
      _
    // Predicated region
    $region38: #{tpu_custom_call.1} parent=1 // pred_check
      _
    $region39: #{tpu_custom_call.1} parent=1 // pred_check_branch
      %85 = sbr.rel (0) target = $region41
    $region40: #{tpu_custom_call.1} parent=1 // pred_region
      %86 = dma.done [#allocation7], 2048
    $region41: #{tpu_custom_call.1} parent=1 // pred_fallthru
      _
    // Predicated region
    $region42: #{tpu_custom_call.1} parent=1 // pred_check
      _
    $region43: #{tpu_custom_call.1} parent=1 // pred_check_branch
      %88 = sbr.rel (0) target = $region45
    $region44: #{tpu_custom_call.1} parent=1 // pred_region
      %89 = dma.done [#allocation10], 2048
    $region45: #{tpu_custom_call.1} parent=1 // pred_fallthru
      _
    // Predicated region
    $region46: #{tpu_custom_call.1} parent=1 // pred_check
      _
    $region47: #{tpu_custom_call.1} parent=1 // pred_check_branch
      %91 = sbr.rel (0) target = $region49
    $region48: #{tpu_custom_call.1} parent=1 // pred_region
      %92 = dma.done [#allocation10], 2048
    $region49: #{tpu_custom_call.1} parent=1 // pred_fallthru
      _
    %v93 = vld [vmem:[#allocation3] sm:$0xff]
    %v94 = vld [vmem:[#allocation3 + $0x8] sm:$0xff]
    %v95 = vld [vmem:[#allocation3 + $0x10] sm:$0xff]
    %v96 = vld [vmem:[#allocation3 + $0x18] sm:$0xff]
    %v97 = vld [vmem:[#allocation3 + $0x20] sm:$0xff]
    %v98 = vld [vmem:[#allocation3 + $0x28] sm:$0xff]
    %v99 = vld [vmem:[#allocation3 + $0x30] sm:$0xff]
    %v100 = vld [vmem:[#allocation3 + $0x38] sm:$0xff]
    %v101 = vld [vmem:[#allocation8] sm:$0xff]
    %v102 = vld [vmem:[#allocation8 + $0x8] sm:$0xff]
    %v103 = vld [vmem:[#allocation8 + $0x10] sm:$0xff]
    %v104 = vld [vmem:[#allocation8 + $0x18] sm:$0xff]
    %v105 = vld [vmem:[#allocation8 + $0x20] sm:$0xff]
    %v106 = vld [vmem:[#allocation8 + $0x28] sm:$0xff]
    %v107 = vld [vmem:[#allocation8 + $0x30] sm:$0xff]
    %v108 = vld [vmem:[#allocation8 + $0x38] sm:$0xff]
    %v109 = vld [vmem:[#allocation8 + $0x40] sm:$0xff]
    %v110 = vld [vmem:[#allocation8 + $0x48] sm:$0xff]
    %v111 = vld [vmem:[#allocation8 + $0x50] sm:$0xff]
    %v112 = vld [vmem:[#allocation8 + $0x58] sm:$0xff]
    %v113 = vld [vmem:[#allocation8 + $0x60] sm:$0xff]
    %v114 = vld [vmem:[#allocation8 + $0x68] sm:$0xff]
    %v115 = vld [vmem:[#allocation8 + $0x70] sm:$0xff]
    %v116 = vld [vmem:[#allocation8 + $0x78] sm:$0xff]
    %v117 = vld [vmem:[%s4] sm:$0x1]
    %v119 = vlaneseq
    %v120 = vshrl.u32 %v119, 7
    %v121 = vsub.s32 0, %v120
    %v122 = vrot.slane %v117, %v121
    %124 = vmatprep.subr.mxu0 0.0
    %125 = vmatpush1.msra.mxu0 %v101
    %126 = vmatprep.subr.mxu0 0.0
    %127 = vmatpush1.msra.mxu0 %v102
    %128 = vmatprep.subr.mxu0 0.0
    %129 = vmatpush1.msra.mxu0 %v103
    %130 = vmatprep.subr.mxu0 0.0
    %131 = vmatpush1.msra.mxu0 %v104
    %132 = vmatprep.subr.mxu0 0.0
    %133 = vmatpush1.msra.mxu0 %v105
    %134 = vmatprep.subr.mxu0 0.0
    %135 = vmatpush1.msra.mxu0 %v106
    %136 = vmatprep.subr.mxu0 0.0
    %137 = vmatpush1.msra.mxu0 %v107
    %138 = vmatprep.subr.mxu0 0.0
    %139 = vmatpush1.msra.mxu0 %v108
    %140 = vmatprep.subr.mxu0 0.0
    %141 = vmatpush1.msra.mxu0 %v109
    %142 = vmatprep.subr.mxu0 0.0
    %143 = vmatpush1.msra.mxu0 %v110
    %144 = vmatprep.subr.mxu0 0.0
    %145 = vmatpush1.msra.mxu0 %v111
    %146 = vmatprep.subr.mxu0 0.0
    %147 = vmatpush1.msra.mxu0 %v112
    %148 = vmatprep.subr.mxu0 0.0
    %149 = vmatpush1.msra.mxu0 %v113
    %150 = vmatprep.subr.mxu0 0.0
    %151 = vmatpush1.msra.mxu0 %v114
    %152 = vmatprep.subr.mxu0 0.0
    %153 = vmatpush1.msra.mxu0 %v115
    %154 = vmatprep.subr.mxu0 0.0
    %155 = vmatpush1.msra.mxu0 %v116
    %156 = vmatprep.subr.mxu0 0.0
    %157 = vmatpush1.msra.mxu0 0.0
    %158 = vmatprep.subr.mxu0 0.0
    %159 = vmatpush1.msra.mxu0 0.0
    %160 = vmatprep.subr.mxu0 0.0
    %161 = vmatpush1.msra.mxu0 0.0
    %162 = vmatprep.subr.mxu0 0.0
    %163 = vmatpush1.msra.mxu0 0.0
    %164 = vmatprep.subr.mxu0 0.0
    %165 = vmatpush1.msra.mxu0 0.0
    %166 = vmatprep.subr.mxu0 0.0
    %167 = vmatpush1.msra.mxu0 0.0
    %168 = vmatprep.subr.mxu0 0.0
    %169 = vmatpush1.msra.mxu0 0.0
    %170 = vmatprep.subr.mxu0 0.0
    %171 = vmatpush1.msra.mxu0 0.0
    %172 = vmatprep.subr.mxu0 0.0
    %173 = vmatpush1.msra.mxu0 0.0
    %174 = vmatprep.subr.mxu0 0.0
    %175 = vmatpush1.msra.mxu0 0.0
    %176 = vmatprep.subr.mxu0 0.0
    %177 = vmatpush1.msra.mxu0 0.0
    %178 = vmatprep.subr.mxu0 0.0
    %179 = vmatpush1.msra.mxu0 0.0
    %180 = vmatprep.subr.mxu0 0.0
    %181 = vmatpush1.msra.mxu0 0.0
    %182 = vmatprep.subr.mxu0 0.0
    %183 = vmatpush1.msra.mxu0 0.0
    %184 = vmatprep.subr.mxu0 0.0
    %185 = vmatpush1.msra.mxu0 0.0
    %186 = vmatprep.subr.mxu0 0.0
    %187 = vmatpush1.msra.mxu0 0.0
    %188 = vmatprep.mubr.f32.mxu0 0.0
    %189 = vmatmul.mubr.f32.gmra.mrb[0].mxu0 %v93
    %v190 = vpop.f32.mrb[0].mxu0
    %v191 = vadd.f32 %v122, %v190
    %v192 = vpop.f32.mrb[0].mxu0
    %193 = vmatprep.mubr.f32.mxu0 0.0
    %194 = vmatmul.mubr.f32.gmra.mrb[0].mxu0 %v94
    %v195 = vpop.f32.mrb[0].mxu0
    %v196 = vadd.f32 %v122, %v195
    %v197 = vpop.f32.mrb[0].mxu0
    %198 = vmatprep.mubr.f32.mxu0 0.0
    %199 = vmatmul.mubr.f32.gmra.mrb[0].mxu0 %v95
    %v200 = vpop.f32.mrb[0].mxu0
    %v201 = vadd.f32 %v122, %v200
    %v202 = vpop.f32.mrb[0].mxu0
    %203 = vmatprep.mubr.f32.mxu0 0.0
    %204 = vmatmul.mubr.f32.gmra.mrb[0].mxu0 %v96
    %v205 = vpop.f32.mrb[0].mxu0
    %v206 = vadd.f32 %v122, %v205
    %v207 = vpop.f32.mrb[0].mxu0
    %208 = vmatprep.mubr.f32.mxu0 0.0
    %209 = vmatmul.mubr.f32.gmra.mrb[0].mxu0 %v97
    %v210 = vpop.f32.mrb[0].mxu0
    %v211 = vadd.f32 %v122, %v210
    %v212 = vpop.f32.mrb[0].mxu0
    %213 = vmatprep.mubr.f32.mxu0 0.0
    %214 = vmatmul.mubr.f32.gmra.mrb[0].mxu0 %v98
    %v215 = vpop.f32.mrb[0].mxu0
    %v216 = vadd.f32 %v122, %v215
    %v217 = vpop.f32.mrb[0].mxu0
    %218 = vmatprep.mubr.f32.mxu0 0.0
    %219 = vmatmul.mubr.f32.gmra.mrb[0].mxu0 %v99
    %v220 = vpop.f32.mrb[0].mxu0
    %v221 = vadd.f32 %v122, %v220
    %v222 = vpop.f32.mrb[0].mxu0
    %223 = vmatprep.mubr.f32.mxu0 0.0
    %224 = vmatmul.mubr.f32.gmra.mrb[0].mxu0 %v100
    %v225 = vpop.f32.mrb[0].mxu0
    %v226 = vadd.f32 %v122, %v225
    %v227 = vpop.f32.mrb[0].mxu0
    %228 = vdwg.mxu0
    %v229 = vld [vmem:[#allocation6] sm:$0xff]
    %v230 = vld [vmem:[#allocation9] sm:$0xff]
    %v231 = vld [vmem:[#allocation9 + $0x8] sm:$0xff]
    %v232 = vld [vmem:[#allocation9 + $0x10] sm:$0xff]
    %v233 = vld [vmem:[#allocation9 + $0x18] sm:$0xff]
    %v234 = vld [vmem:[#allocation9 + $0x20] sm:$0xff]
    %v235 = vld [vmem:[#allocation9 + $0x28] sm:$0xff]
    %v236 = vld [vmem:[#allocation9 + $0x30] sm:$0xff]
    %v237 = vld [vmem:[#allocation9 + $0x38] sm:$0xff]
    %v238 = vld [vmem:[#allocation9 + $0x40] sm:$0xff]
    %v239 = vld [vmem:[#allocation9 + $0x48] sm:$0xff]
    %v240 = vld [vmem:[#allocation9 + $0x50] sm:$0xff]
    %v241 = vld [vmem:[#allocation9 + $0x58] sm:$0xff]
    %v242 = vld [vmem:[#allocation9 + $0x60] sm:$0xff]
    %v243 = vld [vmem:[#allocation9 + $0x68] sm:$0xff]
    %v244 = vld [vmem:[#allocation9 + $0x70] sm:$0xff]
    %v245 = vld [vmem:[#allocation9 + $0x78] sm:$0xff]
    %246 = vmatprep.subr.mxu0 0.0
    %247 = vmatpush1.msra.mxu0 %v230
    %248 = vmatprep.subr.mxu0 0.0
    %249 = vmatpush1.msra.mxu0 %v231
    %250 = vmatprep.subr.mxu0 0.0
    %251 = vmatpush1.msra.mxu0 %v232
    %252 = vmatprep.subr.mxu0 0.0
    %253 = vmatpush1.msra.mxu0 %v233
    %254 = vmatprep.subr.mxu0 0.0
    %255 = vmatpush1.msra.mxu0 %v234
    %256 = vmatprep.subr.mxu0 0.0
    %257 = vmatpush1.msra.mxu0 %v235
    %258 = vmatprep.subr.mxu0 0.0
    %259 = vmatpush1.msra.mxu0 %v236
    %260 = vmatprep.subr.mxu0 0.0
    %261 = vmatpush1.msra.mxu0 %v237
    %262 = vmatprep.subr.mxu0 0.0
    %263 = vmatpush1.msra.mxu0 %v238
    %264 = vmatprep.subr.mxu0 0.0
    %265 = vmatpush1.msra.mxu0 %v239
    %266 = vmatprep.subr.mxu0 0.0
    %267 = vmatpush1.msra.mxu0 %v240
    %268 = vmatprep.subr.mxu0 0.0
    %269 = vmatpush1.msra.mxu0 %v241
    %270 = vmatprep.subr.mxu0 0.0
    %271 = vmatpush1.msra.mxu0 %v242
    %272 = vmatprep.subr.mxu0 0.0
    %273 = vmatpush1.msra.mxu0 %v243
    %274 = vmatprep.subr.mxu0 0.0
    %275 = vmatpush1.msra.mxu0 %v244
    %276 = vmatprep.subr.mxu0 0.0
    %277 = vmatpush1.msra.mxu0 %v245
    %278 = vmatprep.subr.mxu0 0.0
    %279 = vmatpush1.msra.mxu0 0.0
    %280 = vmatprep.subr.mxu0 0.0
    %281 = vmatpush1.msra.mxu0 0.0
    %282 = vmatprep.subr.mxu0 0.0
    %283 = vmatpush1.msra.mxu0 0.0
    %284 = vmatprep.subr.mxu0 0.0
    %285 = vmatpush1.msra.mxu0 0.0
    %286 = vmatprep.subr.mxu0 0.0
    %287 = vmatpush1.msra.mxu0 0.0
    %288 = vmatprep.subr.mxu0 0.0
    %289 = vmatpush1.msra.mxu0 0.0
    %290 = vmatprep.subr.mxu0 0.0
    %291 = vmatpush1.msra.mxu0 0.0
    %292 = vmatprep.subr.mxu0 0.0
    %293 = vmatpush1.msra.mxu0 0.0
    %294 = vmatprep.subr.mxu0 0.0
    %295 = vmatpush1.msra.mxu0 0.0
    %296 = vmatprep.subr.mxu0 0.0
    %297 = vmatpush1.msra.mxu0 0.0
    %298 = vmatprep.subr.mxu0 0.0
    %299 = vmatpush1.msra.mxu0 0.0
    %300 = vmatprep.subr.mxu0 0.0
    %301 = vmatpush1.msra.mxu0 0.0
    %302 = vmatprep.subr.mxu0 0.0
    %303 = vmatpush1.msra.mxu0 0.0
    %304 = vmatprep.subr.mxu0 0.0
    %305 = vmatpush1.msra.mxu0 0.0
    %306 = vmatprep.subr.mxu0 0.0
    %307 = vmatpush1.msra.mxu0 0.0
    %308 = vmatprep.subr.mxu0 0.0
    %309 = vmatpush1.msra.mxu0 0.0
    %310 = vmatprep.mubr.f32.mxu0 0.0
    %311 = vmatmul.mubr.f32.gmra.mrb[0].mxu0 %v229
    %v312 = vpop.f32.mrb[0].mxu0
    %v313 = vadd.f32 0.0, %v312
    %v314 = vpop.f32.mrb[0].mxu0
    %315 = vdwg.mxu0
    %v316 = vadd.f32 %v191, %v313
    %v317 = vtanh.pop %v316
    %318 = vst [vmem:[#allocation2] sm:$0xff] %v317
    %319 = vmatprep.subr.mxu0 0.0
    %320 = vmatpush1.msra.mxu0 %v230
    %321 = vmatprep.subr.mxu0 0.0
    %322 = vmatpush1.msra.mxu0 %v231
    %323 = vmatprep.subr.mxu0 0.0
    %324 = vmatpush1.msra.mxu0 %v232
    %325 = vmatprep.subr.mxu0 0.0
    %326 = vmatpush1.msra.mxu0 %v233
    %327 = vmatprep.subr.mxu0 0.0
    %328 = vmatpush1.msra.mxu0 %v234
    %329 = vmatprep.subr.mxu0 0.0
    %330 = vmatpush1.msra.mxu0 %v235
    %331 = vmatprep.subr.mxu0 0.0
    %332 = vmatpush1.msra.mxu0 %v236
    %333 = vmatprep.subr.mxu0 0.0
    %334 = vmatpush1.msra.mxu0 %v237
    %335 = vmatprep.subr.mxu0 0.0
    %336 = vmatpush1.msra.mxu0 %v238
    %337 = vmatprep.subr.mxu0 0.0
    %338 = vmatpush1.msra.mxu0 %v239
    %339 = vmatprep.subr.mxu0 0.0
    %340 = vmatpush1.msra.mxu0 %v240
    %341 = vmatprep.subr.mxu0 0.0
    %342 = vmatpush1.msra.mxu0 %v241
    %343 = vmatprep.subr.mxu0 0.0
    %344 = vmatpush1.msra.mxu0 %v242
    %345 = vmatprep.subr.mxu0 0.0
    %346 = vmatpush1.msra.mxu0 %v243
    %347 = vmatprep.subr.mxu0 0.0
    %348 = vmatpush1.msra.mxu0 %v244
    %349 = vmatprep.subr.mxu0 0.0
    %350 = vmatpush1.msra.mxu0 %v245
    %351 = vmatprep.subr.mxu0 0.0
    %352 = vmatpush1.msra.mxu0 0.0
    %353 = vmatprep.subr.mxu0 0.0
    %354 = vmatpush1.msra.mxu0 0.0
    %355 = vmatprep.subr.mxu0 0.0
    %356 = vmatpush1.msra.mxu0 0.0
    %357 = vmatprep.subr.mxu0 0.0
    %358 = vmatpush1.msra.mxu0 0.0
    %359 = vmatprep.subr.mxu0 0.0
    %360 = vmatpush1.msra.mxu0 0.0
    %361 = vmatprep.subr.mxu0 0.0
    %362 = vmatpush1.msra.mxu0 0.0
    %363 = vmatprep.subr.mxu0 0.0
    %364 = vmatpush1.msra.mxu0 0.0
    %365 = vmatprep.subr.mxu0 0.0
    %366 = vmatpush1.msra.mxu0 0.0
    %367 = vmatprep.subr.mxu0 0.0
    %368 = vmatpush1.msra.mxu0 0.0
    %369 = vmatprep.subr.mxu0 0.0
    %370 = vmatpush1.msra.mxu0 0.0
    %371 = vmatprep.subr.mxu0 0.0
    %372 = vmatpush1.msra.mxu0 0.0
    %373 = vmatprep.subr.mxu0 0.0
    %374 = vmatpush1.msra.mxu0 0.0
    %375 = vmatprep.subr.mxu0 0.0
    %376 = vmatpush1.msra.mxu0 0.0
    %377 = vmatprep.subr.mxu0 0.0
    %378 = vmatpush1.msra.mxu0 0.0
    %379 = vmatprep.subr.mxu0 0.0
    %380 = vmatpush1.msra.mxu0 0.0
    %381 = vmatprep.subr.mxu0 0.0
    %382 = vmatpush1.msra.mxu0 0.0
    %383 = vmatprep.mubr.f32.mxu0 0.0
    %384 = vmatmul.mubr.f32.gmra.mrb[0].mxu0 %v317
    %v385 = vpop.f32.mrb[0].mxu0
    %v386 = vadd.f32 0.0, %v385
    %v387 = vpop.f32.mrb[0].mxu0
    %388 = vdwg.mxu0
    %v389 = vadd.f32 %v196, %v386
    %v390 = vtanh.pop %v389
    %391 = vst [vmem:[#allocation2 + $0x8] sm:$0xff] %v390
    %392 = vmatprep.subr.mxu0 0.0
    %393 = vmatpush1.msra.mxu0 %v230
    %394 = vmatprep.subr.mxu0 0.0
    %395 = vmatpush1.msra.mxu0 %v231
    %396 = vmatprep.subr.mxu0 0.0
    %397 = vmatpush1.msra.mxu0 %v232
    %398 = vmatprep.subr.mxu0 0.0
    %399 = vmatpush1.msra.mxu0 %v233
    %400 = vmatprep.subr.mxu0 0.0
    %401 = vmatpush1.msra.mxu0 %v234
    %402 = vmatprep.subr.mxu0 0.0
    %403 = vmatpush1.msra.mxu0 %v235
    %404 = vmatprep.subr.mxu0 0.0
    %405 = vmatpush1.msra.mxu0 %v236
    %406 = vmatprep.subr.mxu0 0.0
    %407 = vmatpush1.msra.mxu0 %v237
    %408 = vmatprep.subr.mxu0 0.0
    %409 = vmatpush1.msra.mxu0 %v238
    %410 = vmatprep.subr.mxu0 0.0
    %411 = vmatpush1.msra.mxu0 %v239
    %412 = vmatprep.subr.mxu0 0.0
    %413 = vmatpush1.msra.mxu0 %v240
    %414 = vmatprep.subr.mxu0 0.0
    %415 = vmatpush1.msra.mxu0 %v241
    %416 = vmatprep.subr.mxu0 0.0
    %417 = vmatpush1.msra.mxu0 %v242
    %418 = vmatprep.subr.mxu0 0.0
    %419 = vmatpush1.msra.mxu0 %v243
    %420 = vmatprep.subr.mxu0 0.0
    %421 = vmatpush1.msra.mxu0 %v244
    %422 = vmatprep.subr.mxu0 0.0
    %423 = vmatpush1.msra.mxu0 %v245
    %424 = vmatprep.subr.mxu0 0.0
    %425 = vmatpush1.msra.mxu0 0.0
    %426 = vmatprep.subr.mxu0 0.0
    %427 = vmatpush1.msra.mxu0 0.0
    %428 = vmatprep.subr.mxu0 0.0
    %429 = vmatpush1.msra.mxu0 0.0
    %430 = vmatprep.subr.mxu0 0.0
    %431 = vmatpush1.msra.mxu0 0.0
    %432 = vmatprep.subr.mxu0 0.0
    %433 = vmatpush1.msra.mxu0 0.0
    %434 = vmatprep.subr.mxu0 0.0
    %435 = vmatpush1.msra.mxu0 0.0
    %436 = vmatprep.subr.mxu0 0.0
    %437 = vmatpush1.msra.mxu0 0.0
    %438 = vmatprep.subr.mxu0 0.0
    %439 = vmatpush1.msra.mxu0 0.0
    %440 = vmatprep.subr.mxu0 0.0
    %441 = vmatpush1.msra.mxu0 0.0
    %442 = vmatprep.subr.mxu0 0.0
    %443 = vmatpush1.msra.mxu0 0.0
    %444 = vmatprep.subr.mxu0 0.0
    %445 = vmatpush1.msra.mxu0 0.0
    %446 = vmatprep.subr.mxu0 0.0
    %447 = vmatpush1.msra.mxu0 0.0
    %448 = vmatprep.subr.mxu0 0.0
    %449 = vmatpush1.msra.mxu0 0.0
    %450 = vmatprep.subr.mxu0 0.0
    %451 = vmatpush1.msra.mxu0 0.0
    %452 = vmatprep.subr.mxu0 0.0
    %453 = vmatpush1.msra.mxu0 0.0
    %454 = vmatprep.subr.mxu0 0.0
    %455 = vmatpush1.msra.mxu0 0.0
    %456 = vmatprep.mubr.f32.mxu0 0.0
    %457 = vmatmul.mubr.f32.gmra.mrb[0].mxu0 %v390
    %v458 = vpop.f32.mrb[0].mxu0
    %v459 = vadd.f32 0.0, %v458
    %v460 = vpop.f32.mrb[0].mxu0
    %461 = vdwg.mxu0
    %v462 = vadd.f32 %v201, %v459
    %v463 = vtanh.pop %v462
    %464 = vst [vmem:[#allocation2 + $0x10] sm:$0xff] %v463
    %465 = vmatprep.subr.mxu0 0.0
    %466 = vmatpush1.msra.mxu0 %v230
    %467 = vmatprep.subr.mxu0 0.0
    %468 = vmatpush1.msra.mxu0 %v231
    %469 = vmatprep.subr.mxu0 0.0
    %470 = vmatpush1.msra.mxu0 %v232
    %471 = vmatprep.subr.mxu0 0.0
    %472 = vmatpush1.msra.mxu0 %v233
    %473 = vmatprep.subr.mxu0 0.0
    %474 = vmatpush1.msra.mxu0 %v234
    %475 = vmatprep.subr.mxu0 0.0
    %476 = vmatpush1.msra.mxu0 %v235
    %477 = vmatprep.subr.mxu0 0.0
    %478 = vmatpush1.msra.mxu0 %v236
    %479 = vmatprep.subr.mxu0 0.0
    %480 = vmatpush1.msra.mxu0 %v237
    %481 = vmatprep.subr.mxu0 0.0
    %482 = vmatpush1.msra.mxu0 %v238
    %483 = vmatprep.subr.mxu0 0.0
    %484 = vmatpush1.msra.mxu0 %v239
    %485 = vmatprep.subr.mxu0 0.0
    %486 = vmatpush1.msra.mxu0 %v240
    %487 = vmatprep.subr.mxu0 0.0
    %488 = vmatpush1.msra.mxu0 %v241
    %489 = vmatprep.subr.mxu0 0.0
    %490 = vmatpush1.msra.mxu0 %v242
    %491 = vmatprep.subr.mxu0 0.0
    %492 = vmatpush1.msra.mxu0 %v243
    %493 = vmatprep.subr.mxu0 0.0
    %494 = vmatpush1.msra.mxu0 %v244
    %495 = vmatprep.subr.mxu0 0.0
    %496 = vmatpush1.msra.mxu0 %v245
    %497 = vmatprep.subr.mxu0 0.0
    %498 = vmatpush1.msra.mxu0 0.0
    %499 = vmatprep.subr.mxu0 0.0
    %500 = vmatpush1.msra.mxu0 0.0
    %501 = vmatprep.subr.mxu0 0.0
    %502 = vmatpush1.msra.mxu0 0.0
    %503 = vmatprep.subr.mxu0 0.0
    %504 = vmatpush1.msra.mxu0 0.0
    %505 = vmatprep.subr.mxu0 0.0
    %506 = vmatpush1.msra.mxu0 0.0
    %507 = vmatprep.subr.mxu0 0.0
    %508 = vmatpush1.msra.mxu0 0.0
    %509 = vmatprep.subr.mxu0 0.0
    %510 = vmatpush1.msra.mxu0 0.0
    %511 = vmatprep.subr.mxu0 0.0
    %512 = vmatpush1.msra.mxu0 0.0
    %513 = vmatprep.subr.mxu0 0.0
    %514 = vmatpush1.msra.mxu0 0.0
    %515 = vmatprep.subr.mxu0 0.0
    %516 = vmatpush1.msra.mxu0 0.0
    %517 = vmatprep.subr.mxu0 0.0
    %518 = vmatpush1.msra.mxu0 0.0
    %519 = vmatprep.subr.mxu0 0.0
    %520 = vmatpush1.msra.mxu0 0.0
    %521 = vmatprep.subr.mxu0 0.0
    %522 = vmatpush1.msra.mxu0 0.0
    %523 = vmatprep.subr.mxu0 0.0
    %524 = vmatpush1.msra.mxu0 0.0
    %525 = vmatprep.subr.mxu0 0.0
    %526 = vmatpush1.msra.mxu0 0.0
    %527 = vmatprep.subr.mxu0 0.0
    %528 = vmatpush1.msra.mxu0 0.0
    %529 = vmatprep.mubr.f32.mxu0 0.0
    %530 = vmatmul.mubr.f32.gmra.mrb[0].mxu0 %v463
    %v531 = vpop.f32.mrb[0].mxu0
    %v532 = vadd.f32 0.0, %v531
    %v533 = vpop.f32.mrb[0].mxu0
    %534 = vdwg.mxu0
    %v535 = vadd.f32 %v206, %v532
    %v536 = vtanh.pop %v535
    %537 = vst [vmem:[#allocation2 + $0x18] sm:$0xff] %v536
    %538 = vmatprep.subr.mxu0 0.0
    %539 = vmatpush1.msra.mxu0 %v230
    %540 = vmatprep.subr.mxu0 0.0
    %541 = vmatpush1.msra.mxu0 %v231
    %542 = vmatprep.subr.mxu0 0.0
    %543 = vmatpush1.msra.mxu0 %v232
    %544 = vmatprep.subr.mxu0 0.0
    %545 = vmatpush1.msra.mxu0 %v233
    %546 = vmatprep.subr.mxu0 0.0
    %547 = vmatpush1.msra.mxu0 %v234
    %548 = vmatprep.subr.mxu0 0.0
    %549 = vmatpush1.msra.mxu0 %v235
    %550 = vmatprep.subr.mxu0 0.0
    %551 = vmatpush1.msra.mxu0 %v236
    %552 = vmatprep.subr.mxu0 0.0
    %553 = vmatpush1.msra.mxu0 %v237
    %554 = vmatprep.subr.mxu0 0.0
    %555 = vmatpush1.msra.mxu0 %v238
    %556 = vmatprep.subr.mxu0 0.0
    %557 = vmatpush1.msra.mxu0 %v239
    %558 = vmatprep.subr.mxu0 0.0
    %559 = vmatpush1.msra.mxu0 %v240
    %560 = vmatprep.subr.mxu0 0.0
    %561 = vmatpush1.msra.mxu0 %v241
    %562 = vmatprep.subr.mxu0 0.0
    %563 = vmatpush1.msra.mxu0 %v242
    %564 = vmatprep.subr.mxu0 0.0
    %565 = vmatpush1.msra.mxu0 %v243
    %566 = vmatprep.subr.mxu0 0.0
    %567 = vmatpush1.msra.mxu0 %v244
    %568 = vmatprep.subr.mxu0 0.0
    %569 = vmatpush1.msra.mxu0 %v245
    %570 = vmatprep.subr.mxu0 0.0
    %571 = vmatpush1.msra.mxu0 0.0
    %572 = vmatprep.subr.mxu0 0.0
    %573 = vmatpush1.msra.mxu0 0.0
    %574 = vmatprep.subr.mxu0 0.0
    %575 = vmatpush1.msra.mxu0 0.0
    %576 = vmatprep.subr.mxu0 0.0
    %577 = vmatpush1.msra.mxu0 0.0
    %578 = vmatprep.subr.mxu0 0.0
    %579 = vmatpush1.msra.mxu0 0.0
    %580 = vmatprep.subr.mxu0 0.0
    %581 = vmatpush1.msra.mxu0 0.0
    %582 = vmatprep.subr.mxu0 0.0
    %583 = vmatpush1.msra.mxu0 0.0
    %584 = vmatprep.subr.mxu0 0.0
    %585 = vmatpush1.msra.mxu0 0.0
    %586 = vmatprep.subr.mxu0 0.0
    %587 = vmatpush1.msra.mxu0 0.0
    %588 = vmatprep.subr.mxu0 0.0
    %589 = vmatpush1.msra.mxu0 0.0
    %590 = vmatprep.subr.mxu0 0.0
    %591 = vmatpush1.msra.mxu0 0.0
    %592 = vmatprep.subr.mxu0 0.0
    %593 = vmatpush1.msra.mxu0 0.0
    %594 = vmatprep.subr.mxu0 0.0
    %595 = vmatpush1.msra.mxu0 0.0
    %596 = vmatprep.subr.mxu0 0.0
    %597 = vmatpush1.msra.mxu0 0.0
    %598 = vmatprep.subr.mxu0 0.0
    %599 = vmatpush1.msra.mxu0 0.0
    %600 = vmatprep.subr.mxu0 0.0
    %601 = vmatpush1.msra.mxu0 0.0
    %602 = vmatprep.mubr.f32.mxu0 0.0
    %603 = vmatmul.mubr.f32.gmra.mrb[0].mxu0 %v536
    %v604 = vpop.f32.mrb[0].mxu0
    %v605 = vadd.f32 0.0, %v604
    %v606 = vpop.f32.mrb[0].mxu0
    %607 = vdwg.mxu0
    %v608 = vadd.f32 %v211, %v605
    %v609 = vtanh.pop %v608
    %610 = vst [vmem:[#allocation2 + $0x20] sm:$0xff] %v609
    %611 = vmatprep.subr.mxu0 0.0
    %612 = vmatpush1.msra.mxu0 %v230
    %613 = vmatprep.subr.mxu0 0.0
    %614 = vmatpush1.msra.mxu0 %v231
    %615 = vmatprep.subr.mxu0 0.0
    %616 = vmatpush1.msra.mxu0 %v232
    %617 = vmatprep.subr.mxu0 0.0
    %618 = vmatpush1.msra.mxu0 %v233
    %619 = vmatprep.subr.mxu0 0.0
    %620 = vmatpush1.msra.mxu0 %v234
    %621 = vmatprep.subr.mxu0 0.0
    %622 = vmatpush1.msra.mxu0 %v235
    %623 = vmatprep.subr.mxu0 0.0
    %624 = vmatpush1.msra.mxu0 %v236
    %625 = vmatprep.subr.mxu0 0.0
    %626 = vmatpush1.msra.mxu0 %v237
    %627 = vmatprep.subr.mxu0 0.0
    %628 = vmatpush1.msra.mxu0 %v238
    %629 = vmatprep.subr.mxu0 0.0
    %630 = vmatpush1.msra.mxu0 %v239
    %631 = vmatprep.subr.mxu0 0.0
    %632 = vmatpush1.msra.mxu0 %v240
    %633 = vmatprep.subr.mxu0 0.0
    %634 = vmatpush1.msra.mxu0 %v241
    %635 = vmatprep.subr.mxu0 0.0
    %636 = vmatpush1.msra.mxu0 %v242
    %637 = vmatprep.subr.mxu0 0.0
    %638 = vmatpush1.msra.mxu0 %v243
    %639 = vmatprep.subr.mxu0 0.0
    %640 = vmatpush1.msra.mxu0 %v244
    %641 = vmatprep.subr.mxu0 0.0
    %642 = vmatpush1.msra.mxu0 %v245
    %643 = vmatprep.subr.mxu0 0.0
    %644 = vmatpush1.msra.mxu0 0.0
    %645 = vmatprep.subr.mxu0 0.0
    %646 = vmatpush1.msra.mxu0 0.0
    %647 = vmatprep.subr.mxu0 0.0
    %648 = vmatpush1.msra.mxu0 0.0
    %649 = vmatprep.subr.mxu0 0.0
    %650 = vmatpush1.msra.mxu0 0.0
    %651 = vmatprep.subr.mxu0 0.0
    %652 = vmatpush1.msra.mxu0 0.0
    %653 = vmatprep.subr.mxu0 0.0
    %654 = vmatpush1.msra.mxu0 0.0
    %655 = vmatprep.subr.mxu0 0.0
    %656 = vmatpush1.msra.mxu0 0.0
    %657 = vmatprep.subr.mxu0 0.0
    %658 = vmatpush1.msra.mxu0 0.0
    %659 = vmatprep.subr.mxu0 0.0
    %660 = vmatpush1.msra.mxu0 0.0
    %661 = vmatprep.subr.mxu0 0.0
    %662 = vmatpush1.msra.mxu0 0.0
    %663 = vmatprep.subr.mxu0 0.0
    %664 = vmatpush1.msra.mxu0 0.0
    %665 = vmatprep.subr.mxu0 0.0
    %666 = vmatpush1.msra.mxu0 0.0
    %667 = vmatprep.subr.mxu0 0.0
    %668 = vmatpush1.msra.mxu0 0.0
    %669 = vmatprep.subr.mxu0 0.0
    %670 = vmatpush1.msra.mxu0 0.0
    %671 = vmatprep.subr.mxu0 0.0
    %672 = vmatpush1.msra.mxu0 0.0
    %673 = vmatprep.subr.mxu0 0.0
    %674 = vmatpush1.msra.mxu0 0.0
    %675 = vmatprep.mubr.f32.mxu0 0.0
    %676 = vmatmul.mubr.f32.gmra.mrb[0].mxu0 %v609
    %v677 = vpop.f32.mrb[0].mxu0
    %v678 = vadd.f32 0.0, %v677
    %v679 = vpop.f32.mrb[0].mxu0
    %680 = vdwg.mxu0
    %v681 = vadd.f32 %v216, %v678
    %v682 = vtanh.pop %v681
    %683 = vst [vmem:[#allocation2 + $0x28] sm:$0xff] %v682
    %684 = vmatprep.subr.mxu0 0.0
    %685 = vmatpush1.msra.mxu0 %v230
    %686 = vmatprep.subr.mxu0 0.0
    %687 = vmatpush1.msra.mxu0 %v231
    %688 = vmatprep.subr.mxu0 0.0
    %689 = vmatpush1.msra.mxu0 %v232
    %690 = vmatprep.subr.mxu0 0.0
    %691 = vmatpush1.msra.mxu0 %v233
    %692 = vmatprep.subr.mxu0 0.0
    %693 = vmatpush1.msra.mxu0 %v234
    %694 = vmatprep.subr.mxu0 0.0
    %695 = vmatpush1.msra.mxu0 %v235
    %696 = vmatprep.subr.mxu0 0.0
    %697 = vmatpush1.msra.mxu0 %v236
    %698 = vmatprep.subr.mxu0 0.0
    %699 = vmatpush1.msra.mxu0 %v237
    %700 = vmatprep.subr.mxu0 0.0
    %701 = vmatpush1.msra.mxu0 %v238
    %702 = vmatprep.subr.mxu0 0.0
    %703 = vmatpush1.msra.mxu0 %v239
    %704 = vmatprep.subr.mxu0 0.0
    %705 = vmatpush1.msra.mxu0 %v240
    %706 = vmatprep.subr.mxu0 0.0
    %707 = vmatpush1.msra.mxu0 %v241
    %708 = vmatprep.subr.mxu0 0.0
    %709 = vmatpush1.msra.mxu0 %v242
    %710 = vmatprep.subr.mxu0 0.0
    %711 = vmatpush1.msra.mxu0 %v243
    %712 = vmatprep.subr.mxu0 0.0
    %713 = vmatpush1.msra.mxu0 %v244
    %714 = vmatprep.subr.mxu0 0.0
    %715 = vmatpush1.msra.mxu0 %v245
    %716 = vmatprep.subr.mxu0 0.0
    %717 = vmatpush1.msra.mxu0 0.0
    %718 = vmatprep.subr.mxu0 0.0
    %719 = vmatpush1.msra.mxu0 0.0
    %720 = vmatprep.subr.mxu0 0.0
    %721 = vmatpush1.msra.mxu0 0.0
    %722 = vmatprep.subr.mxu0 0.0
    %723 = vmatpush1.msra.mxu0 0.0
    %724 = vmatprep.subr.mxu0 0.0
    %725 = vmatpush1.msra.mxu0 0.0
    %726 = vmatprep.subr.mxu0 0.0
    %727 = vmatpush1.msra.mxu0 0.0
    %728 = vmatprep.subr.mxu0 0.0
    %729 = vmatpush1.msra.mxu0 0.0
    %730 = vmatprep.subr.mxu0 0.0
    %731 = vmatpush1.msra.mxu0 0.0
    %732 = vmatprep.subr.mxu0 0.0
    %733 = vmatpush1.msra.mxu0 0.0
    %734 = vmatprep.subr.mxu0 0.0
    %735 = vmatpush1.msra.mxu0 0.0
    %736 = vmatprep.subr.mxu0 0.0
    %737 = vmatpush1.msra.mxu0 0.0
    %738 = vmatprep.subr.mxu0 0.0
    %739 = vmatpush1.msra.mxu0 0.0
    %740 = vmatprep.subr.mxu0 0.0
    %741 = vmatpush1.msra.mxu0 0.0
    %742 = vmatprep.subr.mxu0 0.0
    %743 = vmatpush1.msra.mxu0 0.0
    %744 = vmatprep.subr.mxu0 0.0
    %745 = vmatpush1.msra.mxu0 0.0
    %746 = vmatprep.subr.mxu0 0.0
    %747 = vmatpush1.msra.mxu0 0.0
    %748 = vmatprep.mubr.f32.mxu0 0.0
    %749 = vmatmul.mubr.f32.gmra.mrb[0].mxu0 %v682
    %v750 = vpop.f32.mrb[0].mxu0
    %v751 = vadd.f32 0.0, %v750
    %v752 = vpop.f32.mrb[0].mxu0
    %753 = vdwg.mxu0
    %v754 = vadd.f32 %v221, %v751
    %v755 = vtanh.pop %v754
    %756 = vst [vmem:[#allocation2 + $0x30] sm:$0xff] %v755
    %757 = vmatprep.subr.mxu0 0.0
    %758 = vmatpush1.msra.mxu0 %v230
    %759 = vmatprep.subr.mxu0 0.0
    %760 = vmatpush1.msra.mxu0 %v231
    %761 = vmatprep.subr.mxu0 0.0
    %762 = vmatpush1.msra.mxu0 %v232
    %763 = vmatprep.subr.mxu0 0.0
    %764 = vmatpush1.msra.mxu0 %v233
    %765 = vmatprep.subr.mxu0 0.0
    %766 = vmatpush1.msra.mxu0 %v234
    %767 = vmatprep.subr.mxu0 0.0
    %768 = vmatpush1.msra.mxu0 %v235
    %769 = vmatprep.subr.mxu0 0.0
    %770 = vmatpush1.msra.mxu0 %v236
    %771 = vmatprep.subr.mxu0 0.0
    %772 = vmatpush1.msra.mxu0 %v237
    %773 = vmatprep.subr.mxu0 0.0
    %774 = vmatpush1.msra.mxu0 %v238
    %775 = vmatprep.subr.mxu0 0.0
    %776 = vmatpush1.msra.mxu0 %v239
    %777 = vmatprep.subr.mxu0 0.0
    %778 = vmatpush1.msra.mxu0 %v240
    %779 = vmatprep.subr.mxu0 0.0
    %780 = vmatpush1.msra.mxu0 %v241
    %781 = vmatprep.subr.mxu0 0.0
    %782 = vmatpush1.msra.mxu0 %v242
    %783 = vmatprep.subr.mxu0 0.0
    %784 = vmatpush1.msra.mxu0 %v243
    %785 = vmatprep.subr.mxu0 0.0
    %786 = vmatpush1.msra.mxu0 %v244
    %787 = vmatprep.subr.mxu0 0.0
    %788 = vmatpush1.msra.mxu0 %v245
    %789 = vmatprep.subr.mxu0 0.0
    %790 = vmatpush1.msra.mxu0 0.0
    %791 = vmatprep.subr.mxu0 0.0
    %792 = vmatpush1.msra.mxu0 0.0
    %793 = vmatprep.subr.mxu0 0.0
    %794 = vmatpush1.msra.mxu0 0.0
    %795 = vmatprep.subr.mxu0 0.0
    %796 = vmatpush1.msra.mxu0 0.0
    %797 = vmatprep.subr.mxu0 0.0
    %798 = vmatpush1.msra.mxu0 0.0
    %799 = vmatprep.subr.mxu0 0.0
    %800 = vmatpush1.msra.mxu0 0.0
    %801 = vmatprep.subr.mxu0 0.0
    %802 = vmatpush1.msra.mxu0 0.0
    %803 = vmatprep.subr.mxu0 0.0
    %804 = vmatpush1.msra.mxu0 0.0
    %805 = vmatprep.subr.mxu0 0.0
    %806 = vmatpush1.msra.mxu0 0.0
    %807 = vmatprep.subr.mxu0 0.0
    %808 = vmatpush1.msra.mxu0 0.0
    %809 = vmatprep.subr.mxu0 0.0
    %810 = vmatpush1.msra.mxu0 0.0
    %811 = vmatprep.subr.mxu0 0.0
    %812 = vmatpush1.msra.mxu0 0.0
    %813 = vmatprep.subr.mxu0 0.0
    %814 = vmatpush1.msra.mxu0 0.0
    %815 = vmatprep.subr.mxu0 0.0
    %816 = vmatpush1.msra.mxu0 0.0
    %817 = vmatprep.subr.mxu0 0.0
    %818 = vmatpush1.msra.mxu0 0.0
    %819 = vmatprep.subr.mxu0 0.0
    %820 = vmatpush1.msra.mxu0 0.0
    %821 = vmatprep.mubr.f32.mxu0 0.0
    %822 = vmatmul.mubr.f32.gmra.mrb[0].mxu0 %v755
    %v823 = vpop.f32.mrb[0].mxu0
    %v824 = vadd.f32 0.0, %v823
    %v825 = vpop.f32.mrb[0].mxu0
    %826 = vdwg.mxu0
    %v827 = vadd.f32 %v226, %v824
    %v828 = vtanh.pop %v827
    %829 = vst [vmem:[#allocation2 + $0x38] sm:$0xff] %v828
    %v830 = vld [vmem:[#allocation2] sm:$0xff]
    %v831 = vld [vmem:[#allocation2 + $0x8] sm:$0xff]
    %v832 = vld [vmem:[#allocation2 + $0x10] sm:$0xff]
    %v833 = vld [vmem:[#allocation2 + $0x18] sm:$0xff]
    %v834 = vld [vmem:[#allocation2 + $0x20] sm:$0xff]
    %v835 = vld [vmem:[#allocation2 + $0x28] sm:$0xff]
    %v836 = vld [vmem:[#allocation2 + $0x30] sm:$0xff]
    %v837 = vld [vmem:[#allocation2 + $0x38] sm:$0xff]
    %v838 = vld [vmem:[#allocation11] sm:$0xff]
    %v839 = vld [vmem:[#allocation11 + $0x8] sm:$0xff]
    %v840 = vld [vmem:[#allocation11 + $0x10] sm:$0xff]
    %v841 = vld [vmem:[#allocation11 + $0x18] sm:$0xff]
    %v842 = vld [vmem:[#allocation11 + $0x20] sm:$0xff]
    %v843 = vld [vmem:[#allocation11 + $0x28] sm:$0xff]
    %v844 = vld [vmem:[#allocation11 + $0x30] sm:$0xff]
    %v845 = vld [vmem:[#allocation11 + $0x38] sm:$0xff]
    %v846 = vld [vmem:[#allocation11 + $0x40] sm:$0xff]
    %v847 = vld [vmem:[#allocation11 + $0x48] sm:$0xff]
    %v848 = vld [vmem:[#allocation11 + $0x50] sm:$0xff]
    %v849 = vld [vmem:[#allocation11 + $0x58] sm:$0xff]
    %v850 = vld [vmem:[#allocation11 + $0x60] sm:$0xff]
    %v851 = vld [vmem:[#allocation11 + $0x68] sm:$0xff]
    %v852 = vld [vmem:[#allocation11 + $0x70] sm:$0xff]
    %v853 = vld [vmem:[#allocation11 + $0x78] sm:$0xff]
    %v854 = vld [vmem:[%s6] sm:$0x1]
    %v856 = vlaneseq
    %v857 = vshrl.u32 %v856, 7
    %v858 = vsub.s32 0, %v857
    %v859 = vrot.slane %v854, %v858
    %861 = vmatprep.subr.mxu0 0.0
    %862 = vmatpush1.msra.mxu0 %v838
    %863 = vmatprep.subr.mxu0 0.0
    %864 = vmatpush1.msra.mxu0 %v839
    %865 = vmatprep.subr.mxu0 0.0
    %866 = vmatpush1.msra.mxu0 %v840
    %867 = vmatprep.subr.mxu0 0.0
    %868 = vmatpush1.msra.mxu0 %v841
    %869 = vmatprep.subr.mxu0 0.0
    %870 = vmatpush1.msra.mxu0 %v842
    %871 = vmatprep.subr.mxu0 0.0
    %872 = vmatpush1.msra.mxu0 %v843
    %873 = vmatprep.subr.mxu0 0.0
    %874 = vmatpush1.msra.mxu0 %v844
    %875 = vmatprep.subr.mxu0 0.0
    %876 = vmatpush1.msra.mxu0 %v845
    %877 = vmatprep.subr.mxu0 0.0
    %878 = vmatpush1.msra.mxu0 %v846
    %879 = vmatprep.subr.mxu0 0.0
    %880 = vmatpush1.msra.mxu0 %v847
    %881 = vmatprep.subr.mxu0 0.0
    %882 = vmatpush1.msra.mxu0 %v848
    %883 = vmatprep.subr.mxu0 0.0
    %884 = vmatpush1.msra.mxu0 %v849
    %885 = vmatprep.subr.mxu0 0.0
    %886 = vmatpush1.msra.mxu0 %v850
    %887 = vmatprep.subr.mxu0 0.0
    %888 = vmatpush1.msra.mxu0 %v851
    %889 = vmatprep.subr.mxu0 0.0
    %890 = vmatpush1.msra.mxu0 %v852
    %891 = vmatprep.subr.mxu0 0.0
    %892 = vmatpush1.msra.mxu0 %v853
    %893 = vmatprep.subr.mxu0 0.0
    %894 = vmatpush1.msra.mxu0 0.0
    %895 = vmatprep.subr.mxu0 0.0
    %896 = vmatpush1.msra.mxu0 0.0
    %897 = vmatprep.subr.mxu0 0.0
    %898 = vmatpush1.msra.mxu0 0.0
    %899 = vmatprep.subr.mxu0 0.0
    %900 = vmatpush1.msra.mxu0 0.0
    %901 = vmatprep.subr.mxu0 0.0
    %902 = vmatpush1.msra.mxu0 0.0
    %903 = vmatprep.subr.mxu0 0.0
    %904 = vmatpush1.msra.mxu0 0.0
    %905 = vmatprep.subr.mxu0 0.0
    %906 = vmatpush1.msra.mxu0 0.0
    %907 = vmatprep.subr.mxu0 0.0
    %908 = vmatpush1.msra.mxu0 0.0
    %909 = vmatprep.subr.mxu0 0.0
    %910 = vmatpush1.msra.mxu0 0.0
    %911 = vmatprep.subr.mxu0 0.0
    %912 = vmatpush1.msra.mxu0 0.0
    %913 = vmatprep.subr.mxu0 0.0
    %914 = vmatpush1.msra.mxu0 0.0
    %915 = vmatprep.subr.mxu0 0.0
    %916 = vmatpush1.msra.mxu0 0.0
    %917 = vmatprep.subr.mxu0 0.0
    %918 = vmatpush1.msra.mxu0 0.0
    %919 = vmatprep.subr.mxu0 0.0
    %920 = vmatpush1.msra.mxu0 0.0
    %921 = vmatprep.subr.mxu0 0.0
    %922 = vmatpush1.msra.mxu0 0.0
    %923 = vmatprep.subr.mxu0 0.0
    %924 = vmatpush1.msra.mxu0 0.0
    %925 = vmatprep.mubr.f32.mxu0 0.0
    %926 = vmatmul.mubr.f32.gmra.mrb[0].mxu0 %v830
    %v927 = vpop.f32.mrb[0].mxu0
    %v928 = vadd.f32 %v859, %v927
    %v929 = vpop.f32.mrb[0].mxu0
    %930 = vmatprep.mubr.f32.mxu0 0.0
    %931 = vmatmul.mubr.f32.gmra.mrb[0].mxu0 %v831
    %v932 = vpop.f32.mrb[0].mxu0
    %v933 = vadd.f32 %v859, %v932
    %v934 = vpop.f32.mrb[0].mxu0
    %935 = vmatprep.mubr.f32.mxu0 0.0
    %936 = vmatmul.mubr.f32.gmra.mrb[0].mxu0 %v832
    %v937 = vpop.f32.mrb[0].mxu0
    %v938 = vadd.f32 %v859, %v937
    %v939 = vpop.f32.mrb[0].mxu0
    %940 = vmatprep.mubr.f32.mxu0 0.0
    %941 = vmatmul.mubr.f32.gmra.mrb[0].mxu0 %v833
    %v942 = vpop.f32.mrb[0].mxu0
    %v943 = vadd.f32 %v859, %v942
    %v944 = vpop.f32.mrb[0].mxu0
    %945 = vmatprep.mubr.f32.mxu0 0.0
    %946 = vmatmul.mubr.f32.gmra.mrb[0].mxu0 %v834
    %v947 = vpop.f32.mrb[0].mxu0
    %v948 = vadd.f32 %v859, %v947
    %v949 = vpop.f32.mrb[0].mxu0
    %950 = vmatprep.mubr.f32.mxu0 0.0
    %951 = vmatmul.mubr.f32.gmra.mrb[0].mxu0 %v835
    %v952 = vpop.f32.mrb[0].mxu0
    %v953 = vadd.f32 %v859, %v952
    %v954 = vpop.f32.mrb[0].mxu0
    %955 = vmatprep.mubr.f32.mxu0 0.0
    %956 = vmatmul.mubr.f32.gmra.mrb[0].mxu0 %v836
    %v957 = vpop.f32.mrb[0].mxu0
    %v958 = vadd.f32 %v859, %v957
    %v959 = vpop.f32.mrb[0].mxu0
    %960 = vmatprep.mubr.f32.mxu0 0.0
    %961 = vmatmul.mubr.f32.gmra.mrb[0].mxu0 %v837
    %v962 = vpop.f32.mrb[0].mxu0
    %v963 = vadd.f32 %v859, %v962
    %v964 = vpop.f32.mrb[0].mxu0
    %965 = vdwg.mxu0
    %966 = vst [vmem:[#allocation12] sm:$0xff] %v928
    %967 = vst [vmem:[#allocation12 + $0x8] sm:$0xff] %v933
    %968 = vst [vmem:[#allocation12 + $0x10] sm:$0xff] %v938
    %969 = vst [vmem:[#allocation12 + $0x18] sm:$0xff] %v943
    %970 = vst [vmem:[#allocation12 + $0x20] sm:$0xff] %v948
    %971 = vst [vmem:[#allocation12 + $0x28] sm:$0xff] %v953
    %972 = vst [vmem:[#allocation12 + $0x30] sm:$0xff] %v958
    %973 = vst [vmem:[#allocation12 + $0x38] sm:$0xff] %v963
    // Predicated region
    $region50: #{tpu_custom_call.1} parent=1 // pred_check
      _
    $region51: #{tpu_custom_call.1} parent=1 // pred_check_branch
      %975 = sbr.rel (0) target = $region53
    $region52: #{tpu_custom_call.1} parent=1 // pred_region
      %s977 = ssub.s32 1024, 1024
      %978 = vsyncadd [#allocation5], %s977
      %s979 = sshll.u32 [#allocation12], 4
      %s980 = int_to_ptr.vmem [resolvable:$true] %s979
      %985 = dma.vmem_to_hbm [thread:$0]  %s980, 1024, %s7, [#allocation5], 128, 128, 8
    $region53: #{tpu_custom_call.1} parent=1 // pred_fallthru
      _
    // Predicated region
    $region54: #{tpu_custom_call.1} parent=1 // pred_check
      _
    $region55: #{tpu_custom_call.1} parent=1 // pred_check_branch
      %987 = sbr.rel (0) target = $region57
    $region56: #{tpu_custom_call.1} parent=1 // pred_region
      %988 = dma.done [#allocation5], 1024
    $region57: #{tpu_custom_call.1} parent=1 // pred_fallthru
      _
    %989 = vsyncpa [#allocation4], 1
    %990 = vsyncpa [#allocation7], 1
    %991 = vsyncpa [#allocation10], 1
    %992 = vsyncpa [#allocation5], 1

</llo_original>
